<compile_context>
chip_gen: v6e
topology: v6e:2x2x1
jax: 0.10.0
libtpu: 0.0.40
codegen_flags: <defaults>
</compile_context>

<pallas_src>
import functools

import jax
import jax.numpy as jnp
from jax.experimental import pallas as pl
from jax.experimental.pallas import tpu as pltpu

SMOOTH = 1e-06
LANES = 128
MAX_BLOCK_ROWS = 4096   # (4096, 128) f32 tile = 2 MiB per operand per buffer


def _tversky_kernel(pred_ref, true_ref, part_ref,
                    acc_pt_ref, acc_p_ref, acc_t_ref,
                    *, n_valid_last, needs_mask):
    i = pl.program_id(1)               # row-block axis ("arbitrary", reduction)
    last_i = pl.num_programs(1) - 1

    @pl.when(i == 0)
    def _init():
        acc_pt_ref[...] = jnp.zeros_like(acc_pt_ref)
        acc_p_ref[...] = jnp.zeros_like(acc_p_ref)
        acc_t_ref[...] = jnp.zeros_like(acc_t_ref)

    block_rows = pred_ref.shape[0]
    x = pred_ref[...].astype(jnp.float32)
    p = 0.5 * jnp.tanh(0.5 * x) + 0.5          # sigmoid: one EUP push per vreg
    t = true_ref[...].astype(jnp.float32)

    def accumulate(pv, tv):
        # Regroup to (nb, 8, 128) and reduce the leading axis: pure elementwise
        # vreg adds into one-vreg accumulators (no XLU, no big RMW).
        nb = block_rows // 8
        acc_pt_ref[...] += jnp.sum((pv * tv).reshape(nb, 8, LANES), axis=0)
        acc_p_ref[...] += jnp.sum(pv.reshape(nb, 8, LANES), axis=0)
        acc_t_ref[...] += jnp.sum(tv.reshape(nb, 8, LANES), axis=0)

    if needs_mask:
        # Only the global last block has a ragged / stale tail; every other
        # step takes the unmasked path (mask cost is paid exactly once).
        is_last_block = jnp.logical_and(
            pl.program_id(0) == pl.num_programs(0) - 1, i == last_i)

        @pl.when(is_last_block)
        def _masked():
            # Block-local element ids (< block_rows*128 <= 2^20): no int32
            # overflow regardless of total element count n.
            row_ids = jax.lax.broadcasted_iota(jnp.int32, (block_rows, LANES), 0)
            lane_ids = jax.lax.broadcasted_iota(jnp.int32, (block_rows, LANES), 1)
            valid = row_ids * LANES + lane_ids < n_valid_last
            # Keep where-selects (NaN-proof): stale VMEM rows may hold NaNs and
            # zero-padded logits would otherwise contribute sigmoid(0) = 0.5.
            accumulate(jnp.where(valid, p, 0.0), jnp.where(valid, t, 0.0))

        @pl.when(jnp.logical_not(is_last_block))
        def _unmasked():
            accumulate(p, t)
    else:
        accumulate(p, t)

    @pl.when(i == last_i)
    def _finalize():
        part_ref[0, 0, :, :] = acc_pt_ref[...]   # per-core partial sum(p*t)
        part_ref[0, 1, :, :] = acc_p_ref[...]    # per-core partial sum(p)
        part_ref[0, 2, :, :] = acc_t_ref[...]    # per-core partial sum(t)


def tversky_loss(pred_mask, true_mask, alpha=0.5, beta=0.5):
    """Pallas implementation of TverskyLoss.forward (returns a scalar)."""
    p = jnp.reshape(pred_mask, (-1,))
    t = jnp.reshape(true_mask, (-1,))
    # Float inputs travel in their native dtype (bf16 halves HBM traffic) and
    # are cast to f32 in-kernel.  Boolean masks ship as int8 (4x less HBM than
    # mirroring the PyTorch .float() on the host); other integer dtypes fall
    # back to the exact .float() semantics.
    if p.dtype == jnp.bool_:
        p = p.astype(jnp.int8)
    elif not jnp.issubdtype(p.dtype, jnp.floating):
        p = p.astype(jnp.float32)
    if t.dtype == jnp.bool_:
        t = t.astype(jnp.int8)
    elif not jnp.issubdtype(t.dtype, jnp.floating):
        t = t.astype(jnp.float32)

    n = p.shape[0]
    rows_needed = pl.cdiv(n, LANES)
    if rows_needed >= MAX_BLOCK_ROWS:
        block_rows = MAX_BLOCK_ROWS            # multiple of 8 (and of 32 for int8)
        rows_arr = rows_needed
    else:
        # Single-block case: round the (full-dim) block up to a sublane multiple
        # so the in-kernel (block_rows//8, 8, 128) regrouping is exact.
        block_rows = max(8, -(-rows_needed // 8) * 8)
        rows_arr = block_rows

    padded = rows_arr * LANES
    if padded != n:
        # TODO(synk): for large ragged n this jnp.pad copies the inputs once in
        # HBM; a zero-copy path would drive the unpadded 1-D arrays directly,
        # which needs bundle verification that the in-kernel reshape is
        # relayout-free.  Aligned inputs (the common case) take no copy at all.
        p = jnp.pad(p, (0, padded - n))
        t = jnp.pad(t, (0, padded - n))
    p2 = p.reshape(rows_arr, LANES)
    t2 = t.reshape(rows_arr, LANES)

    blocks_total = pl.cdiv(rows_arr, block_rows)
    # Split the row-block axis across v7x's two TensorCores when it divides
    # evenly; on single-TC chips the size-2 "parallel" axis just runs serially.
    num_cores = 2 if (blocks_total >= 2 and blocks_total % 2 == 0) else 1
    blocks_per_core = blocks_total // num_cores

    covered = blocks_total * block_rows * LANES
    needs_mask = covered != n
    n_valid_last = n - (blocks_total - 1) * block_rows * LANES

    kernel = functools.partial(
        _tversky_kernel,
        n_valid_last=int(n_valid_last),
        needs_mask=bool(needs_mask))

    in_map = lambda c, i, bpc=blocks_per_core: (c * bpc + i, 0)

    parts = pl.pallas_call(
        kernel,
        out_shape=jax.ShapeDtypeStruct((num_cores, 3, 8, LANES), jnp.float32),
        grid_spec=pltpu.PrefetchScalarGridSpec(
            num_scalar_prefetch=0,
            grid=(num_cores, blocks_per_core),
            in_specs=[
                pl.BlockSpec((block_rows, LANES), in_map),
                pl.BlockSpec((block_rows, LANES), in_map),
            ],
            out_specs=pl.BlockSpec((1, 3, 8, LANES),
                                   lambda c, i: (c, 0, 0, 0)),
            scratch_shapes=[
                pltpu.VMEM((8, LANES), jnp.float32),
                pltpu.VMEM((8, LANES), jnp.float32),
                pltpu.VMEM((8, LANES), jnp.float32),
            ],
        ),
        compiler_params=pltpu.CompilerParams(
            dimension_semantics=("parallel", "arbitrary"),
        ),
    )(p2, t2)

    # Tiny epilogue in plain JAX: combine per-core one-vreg partials and apply
    # the Tversky formula.
    sums = jnp.sum(parts, axis=(0, 2, 3))        # [sum(p*t), sum(p), sum(t)]
    tp, sp, st = sums[0], sums[1], sums[2]
    fp = sp - tp                                  # sum((1 - t) * p)
    fn = st - tp                                  # sum(t * (1 - p))
    tversky = (tp + SMOOTH) / (tp + alpha * fp + beta * fn + SMOOTH)
    return 1.0 - tversky


def _tversky_loss_ref(pred_mask, true_mask, alpha=0.5, beta=0.5):
    """Pure-JAX reference mirroring the PyTorch module."""
    p = jax.nn.sigmoid(pred_mask.astype(jnp.float32)).reshape(-1)
    t = true_mask.reshape(-1).astype(jnp.float32)
    tp = jnp.sum(p * t)
    fp = jnp.sum((1.0 - t) * p)
    fn = jnp.sum(t * (1.0 - p))
    return 1.0 - (tp + SMOOTH) / (tp + alpha * fp + beta * fn + SMOOTH)


if __name__ == "__main__":
    key = jax.random.PRNGKey(0)
    k1, k2, k3, k4, k5, k6, k7, k8 = jax.random.split(key, 8)

    # 1) Primary shape consistent with the module: NCHW logits + f32 mask.
    pred = jax.random.normal(k1, (2, 4, 16, 16), dtype=jnp.float32)
    true = (jax.random.uniform(k2, (2, 4, 16, 16)) > 0.5).astype(jnp.float32)
    loss = tversky_loss(pred, true, alpha=0.5, beta=0.5)
    jax.block_until_ready(loss)
    ref = _tversky_loss_ref(pred, true, alpha=0.5, beta=0.5)
    assert jnp.allclose(loss, ref, atol=1e-4, rtol=1e-4), (loss, ref)

    # 2) Ragged element count + boolean mask: exercises the gated in-kernel
    #    masking and the int8 transport path.
    pred_r = jax.random.normal(k3, (2, 3, 17, 19), dtype=jnp.float32)
    true_r = jax.random.uniform(k4, (2, 3, 17, 19)) > 0.5          # bool
    loss_r = tversky_loss(pred_r, true_r, alpha=0.3, beta=0.7)
    ref_r = _tversky_loss_ref(pred_r, true_r, alpha=0.3, beta=0.7)
    assert jnp.allclose(loss_r, ref_r, atol=1e-4, rtol=1e-4), (loss_r, ref_r)

    # 3) Exactly one full-size block (4096 rows).
    pred_b = jax.random.normal(k5, (2, 4, 256, 256), dtype=jnp.float32)
    true_b = (jax.random.uniform(k6, (2, 4, 256, 256)) > 0.5).astype(jnp.float32)
    loss_b = tversky_loss(pred_b, true_b)
    ref_b = _tversky_loss_ref(pred_b, true_b)
    assert jnp.allclose(loss_b, ref_b, atol=1e-4, rtol=1e-4), (loss_b, ref_b)

    # 4) Multi-block + 2-way "parallel" core split (grid (2, 2)): exercises
    #    cross-step accumulation and per-core partial combination.
    pred_m = jax.random.normal(k7, (2, 4, 512, 512), dtype=jnp.float32)
    true_m = (jax.random.uniform(k8, (2, 4, 512, 512)) > 0.5).astype(jnp.float32)
    loss_m = tversky_loss(pred_m, true_m, alpha=0.7, beta=0.3)
    ref_m = _tversky_loss_ref(pred_m, true_m, alpha=0.7, beta=0.3)
    assert jnp.allclose(loss_m, ref_m, atol=1e-4, rtol=1e-4), (loss_m, ref_m)

    print("KERNEL_OK")
</pallas_src>

<mosaic_0001>
module attributes {stable_mosaic.version = 11 : i64} {
  func.func @_tversky_kernel(%arg0: i32, %arg1: i32, %arg2: memref<16x128xf32, #tpu.memory_space<vmem>>, %arg3: memref<16x128xf32, #tpu.memory_space<vmem>>, %arg4: memref<1x3x8x128xf32, #tpu.memory_space<vmem>>, %arg5: memref<8x128xf32, #tpu.memory_space<vmem>>, %arg6: memref<8x128xf32, #tpu.memory_space<vmem>>, %arg7: memref<8x128xf32, #tpu.memory_space<vmem>>) attributes {dimension_semantics = [#tpu.dimension_semantics<parallel>, #tpu.dimension_semantics<arbitrary>], iteration_bounds = array<i64: 1, 1>, scalar_prefetch = 0 : i64, scratch_operands = 3 : i64, tpu.core_type = #tpu.core_type<tc>, window_params = [{transform_indices = @transform_0, window_bounds = array<i64: 16, 128>}, {transform_indices = @transform_1, window_bounds = array<i64: 16, 128>}, {transform_indices = @transform_2, window_bounds = array<i64: 1, 3, 8, 128>}]} {
    %c0_i32 = arith.constant 0 : i32
    %0 = arith.cmpi eq, %arg1, %c0_i32 : i32
    %1 = arith.extui %0 : i1 to i32
    %c0_i32_0 = arith.constant 0 : i32
    %2 = arith.cmpi ne, %1, %c0_i32_0 : i32
    scf.if %2 {
      %cst_23 = arith.constant 0.000000e+00 : f32
      %31 = vector.broadcast %cst_23 : f32 to vector<8x128xf32>
      %c0_24 = arith.constant 0 : index
      %c0_25 = arith.constant 0 : index
      %32 = vector.load %arg5[%c0_24, %c0_25] : memref<8x128xf32, #tpu.memory_space<vmem>>, vector<8x128xf32>
      tpu.vector_store %arg5[%c0_24, %c0_25], %31 {strides = array<i32>} : memref<8x128xf32, #tpu.memory_space<vmem>>, vector<8x128xf32>,
      %cst_26 = arith.constant 0.000000e+00 : f32
      %33 = vector.broadcast %cst_26 : f32 to vector<8x128xf32>
      %c0_27 = arith.constant 0 : index
      %c0_28 = arith.constant 0 : index
      %34 = vector.load %arg6[%c0_27, %c0_28] : memref<8x128xf32, #tpu.memory_space<vmem>>, vector<8x128xf32>
      tpu.vector_store %arg6[%c0_27, %c0_28], %33 {strides = array<i32>} : memref<8x128xf32, #tpu.memory_space<vmem>>, vector<8x128xf32>,
      %cst_29 = arith.constant 0.000000e+00 : f32
      %35 = vector.broadcast %cst_29 : f32 to vector<8x128xf32>
      %c0_30 = arith.constant 0 : index
      %c0_31 = arith.constant 0 : index
      %36 = vector.load %arg7[%c0_30, %c0_31] : memref<8x128xf32, #tpu.memory_space<vmem>>, vector<8x128xf32>
      tpu.vector_store %arg7[%c0_30, %c0_31], %35 {strides = array<i32>} : memref<8x128xf32, #tpu.memory_space<vmem>>, vector<8x128xf32>,
    } else {
    }
    %c0 = arith.constant 0 : index
    %c0_1 = arith.constant 0 : index
    %3 = vector.load %arg2[%c0, %c0_1] : memref<16x128xf32, #tpu.memory_space<vmem>>, vector<16x128xf32>
    %cst = arith.constant 5.000000e-01 : f32
    %4 = vector.broadcast %cst : f32 to vector<16x128xf32>
    %5 = arith.mulf %4, %3 : vector<16x128xf32>
    %6 = math.tanh %5 : vector<16x128xf32>
    %cst_2 = arith.constant 5.000000e-01 : f32
    %7 = vector.broadcast %cst_2 : f32 to vector<16x128xf32>
    %8 = arith.mulf %7, %6 : vector<16x128xf32>
    %cst_3 = arith.constant 5.000000e-01 : f32
    %9 = vector.broadcast %cst_3 : f32 to vector<16x128xf32>
    %10 = arith.addf %8, %9 : vector<16x128xf32>
    %c0_4 = arith.constant 0 : index
    %c0_5 = arith.constant 0 : index
    %11 = vector.load %arg3[%c0_4, %c0_5] : memref<16x128xf32, #tpu.memory_space<vmem>>, vector<16x128xf32>
    %c0_6 = arith.constant 0 : index
    %c0_7 = arith.constant 0 : index
    %12 = vector.load %arg5[%c0_6, %c0_7] : memref<8x128xf32, #tpu.memory_space<vmem>>, vector<8x128xf32>
    %13 = arith.mulf %10, %11 : vector<16x128xf32>
    %14 = vector.shape_cast %13 : vector<16x128xf32> to vector<2x8x128xf32>
    %cst_8 = arith.constant dense<0.000000e+00> : vector<8x128xf32>
    %15 = vector.multi_reduction <add>, %14, %cst_8 [0] : vector<2x8x128xf32> to vector<8x128xf32>
    %16 = arith.addf %12, %15 : vector<8x128xf32>
    %c0_9 = arith.constant 0 : index
    %c0_10 = arith.constant 0 : index
    %17 = vector.load %arg5[%c0_9, %c0_10] : memref<8x128xf32, #tpu.memory_space<vmem>>, vector<8x128xf32>
    tpu.vector_store %arg5[%c0_9, %c0_10], %16 {strides = array<i32>} : memref<8x128xf32, #tpu.memory_space<vmem>>, vector<8x128xf32>,
    %c0_11 = arith.constant 0 : index
    %c0_12 = arith.constant 0 : index
    %18 = vector.load %arg6[%c0_11, %c0_12] : memref<8x128xf32, #tpu.memory_space<vmem>>, vector<8x128xf32>
    %19 = vector.shape_cast %10 : vector<16x128xf32> to vector<2x8x128xf32>
    %cst_13 = arith.constant dense<0.000000e+00> : vector<8x128xf32>
    %20 = vector.multi_reduction <add>, %19, %cst_13 [0] : vector<2x8x128xf32> to vector<8x128xf32>
    %21 = arith.addf %18, %20 : vector<8x128xf32>
    %c0_14 = arith.constant 0 : index
    %c0_15 = arith.constant 0 : index
    %22 = vector.load %arg6[%c0_14, %c0_15] : memref<8x128xf32, #tpu.memory_space<vmem>>, vector<8x128xf32>
    tpu.vector_store %arg6[%c0_14, %c0_15], %21 {strides = array<i32>} : memref<8x128xf32, #tpu.memory_space<vmem>>, vector<8x128xf32>,
    %c0_16 = arith.constant 0 : index
    %c0_17 = arith.constant 0 : index
    %23 = vector.load %arg7[%c0_16, %c0_17] : memref<8x128xf32, #tpu.memory_space<vmem>>, vector<8x128xf32>
    %24 = vector.shape_cast %11 : vector<16x128xf32> to vector<2x8x128xf32>
    %cst_18 = arith.constant dense<0.000000e+00> : vector<8x128xf32>
    %25 = vector.multi_reduction <add>, %24, %cst_18 [0] : vector<2x8x128xf32> to vector<8x128xf32>
    %26 = arith.addf %23, %25 : vector<8x128xf32>
    %c0_19 = arith.constant 0 : index
    %c0_20 = arith.constant 0 : index
    %27 = vector.load %arg7[%c0_19, %c0_20] : memref<8x128xf32, #tpu.memory_space<vmem>>, vector<8x128xf32>
    tpu.vector_store %arg7[%c0_19, %c0_20], %26 {strides = array<i32>} : memref<8x128xf32, #tpu.memory_space<vmem>>, vector<8x128xf32>,
    %c0_i32_21 = arith.constant 0 : i32
    %28 = arith.cmpi eq, %arg1, %c0_i32_21 : i32
    %29 = arith.extui %28 : i1 to i32
    %c0_i32_22 = arith.constant 0 : i32
    %30 = arith.cmpi ne, %29, %c0_i32_22 : i32
    scf.if %30 {
      %c0_23 = arith.constant 0 : index
      %c0_24 = arith.constant 0 : index
      %31 = vector.load %arg5[%c0_23, %c0_24] : memref<8x128xf32, #tpu.memory_space<vmem>>, vector<8x128xf32>
      %c0_25 = arith.constant 0 : index
      %c0_26 = arith.constant 0 : index
      %c0_27 = arith.constant 0 : index
      %c0_28 = arith.constant 0 : index
      %32 = vector.load %arg4[%c0_25, %c0_26, %c0_27, %c0_28] : memref<1x3x8x128xf32, #tpu.memory_space<vmem>>, vector<1x1x8x128xf32>
      %33 = vector.shape_cast %32 : vector<1x1x8x128xf32> to vector<8x128xf32>
      %34 = vector.shape_cast %31 : vector<8x128xf32> to vector<1x1x8x128xf32>
      tpu.vector_store %arg4[%c0_25, %c0_26, %c0_27, %c0_28], %34 {strides = array<i32>} : memref<1x3x8x128xf32, #tpu.memory_space<vmem>>, vector<1x1x8x128xf32>,
      %c0_29 = arith.constant 0 : index
      %c0_30 = arith.constant 0 : index
      %35 = vector.load %arg6[%c0_29, %c0_30] : memref<8x128xf32, #tpu.memory_space<vmem>>, vector<8x128xf32>
      %c0_31 = arith.constant 0 : index
      %c1 = arith.constant 1 : index
      %c0_32 = arith.constant 0 : index
      %c0_33 = arith.constant 0 : index
      %36 = vector.load %arg4[%c0_31, %c1, %c0_32, %c0_33] : memref<1x3x8x128xf32, #tpu.memory_space<vmem>>, vector<1x1x8x128xf32>
      %37 = vector.shape_cast %36 : vector<1x1x8x128xf32> to vector<8x128xf32>
      %38 = vector.shape_cast %35 : vector<8x128xf32> to vector<1x1x8x128xf32>
      tpu.vector_store %arg4[%c0_31, %c1, %c0_32, %c0_33], %38 {strides = array<i32>} : memref<1x3x8x128xf32, #tpu.memory_space<vmem>>, vector<1x1x8x128xf32>,
      %c0_34 = arith.constant 0 : index
      %c0_35 = arith.constant 0 : index
      %39 = vector.load %arg7[%c0_34, %c0_35] : memref<8x128xf32, #tpu.memory_space<vmem>>, vector<8x128xf32>
      %c0_36 = arith.constant 0 : index
      %c2 = arith.constant 2 : index
      %c0_37 = arith.constant 0 : index
      %c0_38 = arith.constant 0 : index
      %40 = vector.load %arg4[%c0_36, %c2, %c0_37, %c0_38] : memref<1x3x8x128xf32, #tpu.memory_space<vmem>>, vector<1x1x8x128xf32>
      %41 = vector.shape_cast %40 : vector<1x1x8x128xf32> to vector<8x128xf32>
      %42 = vector.shape_cast %39 : vector<8x128xf32> to vector<1x1x8x128xf32>
      tpu.vector_store %arg4[%c0_36, %c2, %c0_37, %c0_38], %42 {strides = array<i32>} : memref<1x3x8x128xf32, #tpu.memory_space<vmem>>, vector<1x1x8x128xf32>,
    } else {
    }
    return
  }
  func.func @transform_0(%arg0: i32, %arg1: i32) -> (i32, i32) {
    %c1_i32 = arith.constant 1 : i32
    %0 = arith.muli %arg0, %c1_i32 : i32
    %1 = arith.addi %0, %arg1 : i32
    %c0_i32 = arith.constant 0 : i32
    %c0_i32_0 = arith.constant 0 : i32
    return %1, %c0_i32 : i32, i32
  }
  func.func @transform_1(%arg0: i32, %arg1: i32) -> (i32, i32) {
    %c1_i32 = arith.constant 1 : i32
    %0 = arith.muli %arg0, %c1_i32 : i32
    %1 = arith.addi %0, %arg1 : i32
    %c0_i32 = arith.constant 0 : i32
    %c0_i32_0 = arith.constant 0 : i32
    return %1, %c0_i32 : i32, i32
  }
  func.func @transform_2(%arg0: i32, %arg1: i32) -> (i32, i32, i32, i32) {
    %c0_i32 = arith.constant 0 : i32
    %c0_i32_0 = arith.constant 0 : i32
    %c0_i32_1 = arith.constant 0 : i32
    %c0_i32_2 = arith.constant 0 : i32
    return %arg0, %c0_i32, %c0_i32_0, %c0_i32_1 : i32, i32, i32, i32
  }
}

</mosaic_0001>

<llo_original>
// kernel: tpu_custom_call.1
$region0: #{tpu_custom_call.1}
  #allocation0 [shape = 'u32[]', space=smem, size = 0x4, offset = 0x4, fixed_abs, tag = 'smem constant byte address 0x4 - core index']
  #allocation1 [shape = 'u32[144,128]{1,0:T(1,128)}', space=vmem, size = 0x12000, scoped, tag = 'internal scratch']
  #allocation2 [shape = 'f32[8,128]{1,0:T(8,128)}', space=vmem, size = 0x1000, scoped, tag = 'scratch operand']
  #allocation3 [shape = 'f32[8,128]{1,0:T(8,128)}', space=vmem, size = 0x1000, scoped, tag = 'scratch operand']
  #allocation4 [shape = 'f32[8,128]{1,0:T(8,128)}', space=vmem, size = 0x1000, scoped, tag = 'scratch operand']
  %s0 = inlined_call_operand.hbm [shape: f32[16,128], index: 0, kind: input, shape index: {}]
  %s1 = inlined_call_operand.hbm [shape: f32[16,128], index: 1, kind: input, shape index: {}]
  %s2 = inlined_call_operand.hbm [shape: f32[1,3,8,128], index: 2, kind: output, shape index: {}]
  %s3 = sld [smem:[#allocation0]]
  $region34: #{tpu_custom_call.1} parent=0
    _
  %s5 = ssub.s32 1, %s3
  %s6 = scalar_select 0, %s5, %s3
  $region1: #{tpu_custom_call.1} parent=0
    #allocation5 [shape = 'u8[8192]{0}', space=vmem, size = 0x2000, scoped, tag = 'input window, operand 0, single buffered']
    #allocation6 [shape = 's32[1]{0}', space=sflag, size = 0x4, scoped, tag = 'scoped memory for tpu_custom_call.1']
    #allocation7 [shape = 's32[1]{0}', space=sflag, size = 0x4, scoped, tag = 'scoped memory for tpu_custom_call.1']
    #allocation8 [shape = 'u8[8192]{0}', space=vmem, size = 0x2000, scoped, tag = 'input window, operand 1, single buffered']
    #allocation9 [shape = 's32[1]{0}', space=sflag, size = 0x4, scoped, tag = 'scoped memory for tpu_custom_call.1']
    #allocation10 [shape = 'u8[12288]{0}', space=vmem, size = 0x3000, scoped, tag = 'output window, operand 0, single buffered']
    %7 = vsyncpa [#allocation6], 0
    %8 = vsyncpa [#allocation9], 0
    %9 = vsyncpa [#allocation7], 0
    // Predicated region
    $region2: #{tpu_custom_call.1} parent=1 // pred_check
      _
    $region3: #{tpu_custom_call.1} parent=1 // pred_check_branch
      %11 = sbr.rel (0) target = $region5
    $region4: #{tpu_custom_call.1} parent=1 // pred_region
      %s12 = sadd.s32 0, 0
      %s13 = smul.u32 2, %s12
      %s15 = ssub.s32 256, 256
      %16 = vsyncadd [#allocation6], %s15
      %s17 = smul.addr %s13, 128
      %s18 = scalar_lea.hbm %s0, %s17
      %s19 = sshll.u32 [#allocation5], 4
      %s20 = int_to_ptr.vmem [resolvable:$true] %s19
      %25 = dma.hbm_to_vmem [thread:$0]  %s18, 256, %s20, [#allocation6], 128, 128, 8
    $region5: #{tpu_custom_call.1} parent=1 // pred_fallthru
      _
    // Predicated region
    $region6: #{tpu_custom_call.1} parent=1 // pred_check
      _
    $region7: #{tpu_custom_call.1} parent=1 // pred_check_branch
      %27 = sbr.rel (0) target = $region9
    $region8: #{tpu_custom_call.1} parent=1 // pred_region
      %s28 = sadd.s32 0, 0
      %s29 = smul.u32 2, %s28
      %s31 = ssub.s32 256, 256
      %32 = vsyncadd [#allocation9], %s31
      %s33 = smul.addr %s29, 128
      %s34 = scalar_lea.hbm %s1, %s33
      %s35 = sshll.u32 [#allocation8], 4
      %s36 = int_to_ptr.vmem [resolvable:$true] %s35
      %41 = dma.hbm_to_vmem [thread:$0]  %s34, 256, %s36, [#allocation9], 128, 128, 8
    $region9: #{tpu_custom_call.1} parent=1 // pred_fallthru
      _
    // Predicated region
    $region10: #{tpu_custom_call.1} parent=1 // pred_check
      _
    $region11: #{tpu_custom_call.1} parent=1 // pred_check_branch
      %43 = sbr.rel (0) target = $region13
    $region12: #{tpu_custom_call.1} parent=1 // pred_region
      %44 = dma.done [#allocation6], 256
    $region13: #{tpu_custom_call.1} parent=1 // pred_fallthru
      _
    // Predicated region
    $region14: #{tpu_custom_call.1} parent=1 // pred_check
      _
    $region15: #{tpu_custom_call.1} parent=1 // pred_check_branch
      %46 = sbr.rel (0) target = $region17
    $region16: #{tpu_custom_call.1} parent=1 // pred_region
      %47 = dma.done [#allocation9], 256
    $region17: #{tpu_custom_call.1} parent=1 // pred_fallthru
      _
    %s48 = sadd.s32 0, 0
    %s49 = smul.u32 2, %s48
    %s50 = sadd.s32 0, 0
    %s51 = smul.u32 2, %s50
    %p52 = scmp.eq.s32.totalorder 0, 0
    // Predicated region
    $region18: #{tpu_custom_call.1} parent=1 // pred_check
      %p53 = pneg %p52
    $region19: #{tpu_custom_call.1} parent=1 // pred_check_branch
      %55 = sbr.rel (%p53) target = $region21
    $region20: #{tpu_custom_call.1} parent=1 // pred_region
      %56 = vst [vmem:[#allocation2] sm:$0xff] 0.0
      %57 = vst [vmem:[#allocation3] sm:$0xff] 0.0
      %58 = vst [vmem:[#allocation4] sm:$0xff] 0.0
    $region21: #{tpu_custom_call.1} parent=1 // pred_fallthru
      _
    %v59 = vld [vmem:[#allocation5] sm:$0xff]
    %v60 = vld [vmem:[#allocation5 + $0x8] sm:$0xff]
    %v61 = vmul.f32 %v59, 0.5
    %v62 = vmul.f32 %v60, 0.5
    %v63 = vtanh.pop %v61
    %v64 = vtanh.pop %v62
    %v65 = vmul.f32 %v63, 0.5
    %v66 = vmul.f32 %v64, 0.5
    %v67 = vadd.f32 %v65, 0.5
    %v68 = vadd.f32 %v66, 0.5
    %v69 = vld [vmem:[#allocation8] sm:$0xff]
    %v70 = vld [vmem:[#allocation8 + $0x8] sm:$0xff]
    %v71 = vld [vmem:[#allocation2] sm:$0xff]
    %v72 = vmul.f32 %v67, %v69
    %v73 = vmul.f32 %v68, %v70
    %v74 = vadd.f32 %v72, %v73
    %v75 = vadd.f32 %v71, %v74
    %76 = vst [vmem:[#allocation2] sm:$0xff] %v75
    %v77 = vld [vmem:[#allocation3] sm:$0xff]
    %v78 = vadd.f32 %v67, %v68
    %v79 = vadd.f32 %v77, %v78
    %80 = vst [vmem:[#allocation3] sm:$0xff] %v79
    %v81 = vld [vmem:[#allocation4] sm:$0xff]
    %v82 = vadd.f32 %v69, %v70
    %v83 = vadd.f32 %v81, %v82
    %84 = vst [vmem:[#allocation4] sm:$0xff] %v83
    // Predicated region
    $region22: #{tpu_custom_call.1} parent=1 // pred_check
      %p85 = pneg %p52
    $region23: #{tpu_custom_call.1} parent=1 // pred_check_branch
      %87 = sbr.rel (%p85) target = $region25
    $region24: #{tpu_custom_call.1} parent=1 // pred_region
      %v88 = vld [vmem:[#allocation2] sm:$0xff]
      %89 = vst [vmem:[#allocation10] sm:$0xff] %v88
      %v90 = vld [vmem:[#allocation3] sm:$0xff]
      %s91 = scalar_lea.vmem [#allocation10], 8
      %92 = vst [vmem:[%s91] sm:$0xff] %v90
      %v93 = vld [vmem:[#allocation4] sm:$0xff]
      %s94 = scalar_lea.vmem [#allocation10], 16
      %95 = vst [vmem:[%s94] sm:$0xff] %v93
    $region25: #{tpu_custom_call.1} parent=1 // pred_fallthru
      _
    // Predicated region
    $region26: #{tpu_custom_call.1} parent=1 // pred_check
      _
    $region27: #{tpu_custom_call.1} parent=1 // pred_check_branch
      %97 = sbr.rel (0) target = $region29
    $region28: #{tpu_custom_call.1} parent=1 // pred_region
      %s99 = ssub.s32 384, 384
      %100 = vsyncadd [#allocation7], %s99
      %s101 = sshll.u32 [#allocation10], 4
      %s102 = int_to_ptr.vmem [resolvable:$true] %s101
      %107 = dma.vmem_to_hbm [thread:$0]  %s102, 384, %s2, [#allocation7], 128, 128, 8
    $region29: #{tpu_custom_call.1} parent=1 // pred_fallthru
      _
    // Predicated region
    $region30: #{tpu_custom_call.1} parent=1 // pred_check
      _
    $region31: #{tpu_custom_call.1} parent=1 // pred_check_branch
      %109 = sbr.rel (0) target = $region33
    $region32: #{tpu_custom_call.1} parent=1 // pred_region
      %110 = dma.done [#allocation7], 384
    $region33: #{tpu_custom_call.1} parent=1 // pred_fallthru
      _
    %111 = vsyncpa [#allocation6], 1
    %112 = vsyncpa [#allocation9], 1
    %113 = vsyncpa [#allocation7], 1

</llo_original>
